<compile_context>
chip_gen: v7x
topology: tpu7x:2x2x1
jax: 0.10.0
libtpu: 0.0.40
codegen_flags: <defaults>
</compile_context>

<pallas_src>
import numpy as np
import jax
import jax.numpy as jnp
from jax.experimental import pallas as pl
from jax.experimental.pallas import tpu as pltpu


def _decoder_kernel(x_ref, w1_ref, b1_ref, w2_ref, b2_ref, z_ref):
    # Layer 1 in f32 (K = latent_dims = 32, negligible cost, full precision).
    h = jnp.dot(x_ref[...], w1_ref[...], preferred_element_type=jnp.float32)
    h = jnp.maximum(h + b1_ref[...], 0.0)                      # ReLU, f32
    # Layer 2: (TM, Hp) bf16 @ (Hp, D) bf16 -> f32 accumulation.
    z = jnp.dot(h.astype(jnp.bfloat16), w2_ref[...],
                preferred_element_type=jnp.float32)
    z_ref[...] = (z + b2_ref[...]).astype(z_ref.dtype)


def prepare_params(w1, b1, w2, b2, *, pad_to=128):
    """One-time parameter preparation (call OUTSIDE the per-step forward).

    w1: (hidden, latent), b1: (hidden,)     -- PyTorch nn.Linear layout
    w2: (input_dims, hidden), b2: (input_dims,)
    Returns (w1_t, b1_p, w2_t, b2_p): hidden padded to a multiple of 128,
    weights transposed to (in, out); w1 stays f32, w2 is bf16; biases f32
    (1, out).  Zero padding is exact (padded w2 rows are zero).
    """
    H, L = w1.shape
    D, H2 = w2.shape
    assert H2 == H and b1.shape == (H,) and b2.shape == (D,)
    Hp = ((H + pad_to - 1) // pad_to) * pad_to

    w1_t = jnp.zeros((L, Hp), jnp.float32)
    w1_t = w1_t.at[:, :H].set(jnp.transpose(w1).astype(jnp.float32))
    b1_p = jnp.zeros((1, Hp), jnp.float32)
    b1_p = b1_p.at[:, :H].set(b1.astype(jnp.float32))

    w2_t = jnp.zeros((Hp, D), jnp.bfloat16)
    w2_t = w2_t.at[:H, :].set(jnp.transpose(w2).astype(jnp.bfloat16))
    b2_p = b2.reshape(1, D).astype(jnp.float32)
    return w1_t, b1_p, w2_t, b2_p


def _round_up(v, m):
    return ((v + m - 1) // m) * m


def _choose_tm(B):
    """Adaptive batch-tile size.

    B <= 128        -> single block (TM == B, full-dim block is legal).
    128 < B <= 2048 -> 2 tiles: pipeline overlap + both v7x TensorCores.
    B > 2048        -> ~512-row tiles (>= 4 tiles), amortizes per-step cost.
    TM is a multiple of 8 whenever grid > 1 (block-shape constraint); the
    partial last block is handled by Pallas' masked output writes.
    """
    if B <= 128:
        return B
    if B <= 2048:
        return _round_up(pl.cdiv(B, 2), 8)
    n_tiles = max(4, pl.cdiv(B, 512))
    return _round_up(pl.cdiv(B, n_tiles), 8)


def decoder_forward(x, params):
    """x: (B, latent_dims) f32; params from prepare_params.
    Returns (B, input_dims) f32."""
    w1_t, b1_p, w2_t, b2_p = params
    B, L = x.shape
    assert w1_t.shape[0] == L
    Hp = w1_t.shape[1]
    D = w2_t.shape[1]

    TM = _choose_tm(B)
    grid_b = pl.cdiv(B, TM)

    cost = pl.CostEstimate(
        flops=2 * B * (L * Hp + Hp * D),
        transcendentals=0,
        bytes_accessed=(B * 4 * (L + D)            # x read + z write
                        + w1_t.size * 4 + w2_t.size * 2
                        + (Hp + D) * 4),           # biases
    )

    z = pl.pallas_call(
        _decoder_kernel,
        out_shape=jax.ShapeDtypeStruct((B, D), jnp.float32),
        grid=(grid_b,),
        in_specs=[
            pl.BlockSpec((TM, L), lambda i: (i, 0)),   # x tile (double-buffered)
            pl.BlockSpec((L, Hp), lambda i: (0, 0),    # w1 (resident, single buffer)
                         pipeline_mode=pl.Buffered(1)),
            pl.BlockSpec((1, Hp), lambda i: (0, 0),    # b1
                         pipeline_mode=pl.Buffered(1)),
            pl.BlockSpec((Hp, D), lambda i: (0, 0),    # w2
                         pipeline_mode=pl.Buffered(1)),
            pl.BlockSpec((1, D), lambda i: (0, 0),     # b2
                         pipeline_mode=pl.Buffered(1)),
        ],
        out_specs=pl.BlockSpec((TM, D), lambda i: (i, 0)),
        compiler_params=pltpu.CompilerParams(
            dimension_semantics=("parallel",)),
        cost_estimate=cost,
    )(x, w1_t, b1_p, w2_t, b2_p)

    return z


def _init_linear(key, out_features, in_features, dtype=jnp.float32):
    # Deterministic init mimicking nn.Linear: U(-1/sqrt(fan_in), 1/sqrt(fan_in))
    kw, kb = jax.random.split(key)
    bound = 1.0 / np.sqrt(in_features)
    w = jax.random.uniform(kw, (out_features, in_features), dtype, -bound, bound)
    b = jax.random.uniform(kb, (out_features,), dtype, -bound, bound)
    return w, b


def _reference(x, w1, b1, w2, b2):
    h = jnp.maximum(x @ w1.T + b1, 0.0)
    return h @ w2.T + b2


if __name__ == "__main__":
    # Module-consistent small shapes: latent_dims=32, hidden=200 (fixed by the
    # module: self.dim = 200), input_dims=256, batch=2.
    latent_dims = 32
    hidden = 200
    input_dims = 256

    key = jax.random.PRNGKey(0)
    kx, k1, k2, kx2 = jax.random.split(key, 4)

    w1, b1 = _init_linear(k1, hidden, latent_dims)     # linear1dec
    w2, b2 = _init_linear(k2, input_dims, hidden)      # linear2dec
    params = prepare_params(w1, b1, w2, b2)            # one-time prep

    fwd = jax.jit(decoder_forward)

    # --- small batch (single block, TM == B, grid = 1) ---
    B = 2
    x = jax.random.normal(kx, (B, latent_dims), dtype=jnp.float32)
    z = jax.block_until_ready(fwd(x, params))
    assert z.shape == (B, input_dims)
    z_ref = _reference(x, w1, b1, w2, b2)
    # f32 layer-1, bf16 h / w2 with f32 accumulation -> loosened tolerance
    np.testing.assert_allclose(np.asarray(z), np.asarray(z_ref),
                               rtol=2e-2, atol=2e-2)

    # --- larger, non-divisible batch: grid = 2, partial (masked) last block,
    #     no wrapper-side pad / slice ---
    B2 = 600
    x2 = jax.random.normal(kx2, (B2, latent_dims), dtype=jnp.float32)
    z2 = jax.block_until_ready(fwd(x2, params))
    assert z2.shape == (B2, input_dims)
    z2_ref = _reference(x2, w1, b1, w2, b2)
    np.testing.assert_allclose(np.asarray(z2), np.asarray(z2_ref),
                               rtol=2e-2, atol=2e-2)

    print("KERNEL_OK")
</pallas_src>

<mosaic_0001>
module attributes {stable_mosaic.version = 11 : i64} {
  func.func @_decoder_kernel(%arg0: i32, %arg1: memref<2x32xf32, #tpu.memory_space<vmem>>, %arg2: memref<32x256xf32, #tpu.memory_space<vmem>>, %arg3: memref<1x256xf32, #tpu.memory_space<vmem>>, %arg4: memref<256x256xbf16, #tpu.memory_space<vmem>>, %arg5: memref<1x256xf32, #tpu.memory_space<vmem>>, %arg6: memref<2x256xf32, #tpu.memory_space<vmem>>) attributes {dimension_semantics = [#tpu.dimension_semantics<parallel>], iteration_bounds = array<i64: 1>, scalar_prefetch = 0 : i64, scratch_operands = 0 : i64, tpu.core_type = #tpu.core_type<tc>, window_params = [{transform_indices = @transform_0, window_bounds = array<i64: 2, 32>}, {pipeline_mode = #tpu.pipeline_mode<synchronous>, transform_indices = @transform_1, window_bounds = array<i64: 32, 256>}, {pipeline_mode = #tpu.pipeline_mode<synchronous>, transform_indices = @transform_2, window_bounds = array<i64: 1, 256>}, {pipeline_mode = #tpu.pipeline_mode<synchronous>, transform_indices = @transform_3, window_bounds = array<i64: 256, 256>}, {pipeline_mode = #tpu.pipeline_mode<synchronous>, transform_indices = @transform_4, window_bounds = array<i64: 1, 256>}, {transform_indices = @transform_5, window_bounds = array<i64: 2, 256>}]} {
    %c0 = arith.constant 0 : index
    %c0_0 = arith.constant 0 : index
    %0 = vector.load %arg1[%c0, %c0_0] : memref<2x32xf32, #tpu.memory_space<vmem>>, vector<2x32xf32>
    %c0_1 = arith.constant 0 : index
    %c0_2 = arith.constant 0 : index
    %1 = vector.load %arg2[%c0_1, %c0_2] : memref<32x256xf32, #tpu.memory_space<vmem>>, vector<32x256xf32>
    %cst = arith.constant dense<0.000000e+00> : vector<2x256xf32>
    %2 = tpu.matmul %0, %1, %cst {dimension_numbers = #tpu.dot_dimension_numbers<[1], [0], [0], [1], [0, 0, 1, 1], [], []>} : vector<2x32xf32>, vector<32x256xf32>, vector<2x256xf32> -> vector<2x256xf32>
    %c0_3 = arith.constant 0 : index
    %c0_4 = arith.constant 0 : index
    %3 = vector.load %arg3[%c0_3, %c0_4] : memref<1x256xf32, #tpu.memory_space<vmem>>, vector<1x256xf32>
    %4 = vector.broadcast %3 : vector<1x256xf32> to vector<2x256xf32>
    %5 = arith.addf %2, %4 : vector<2x256xf32>
    %cst_5 = arith.constant 0.000000e+00 : f32
    %6 = vector.broadcast %cst_5 : f32 to vector<2x256xf32>
    %7 = arith.maximumf %5, %6 : vector<2x256xf32>
    %8 = arith.truncf %7 : vector<2x256xf32> to vector<2x256xbf16>
    %c0_6 = arith.constant 0 : index
    %c0_7 = arith.constant 0 : index
    %9 = vector.load %arg4[%c0_6, %c0_7] : memref<256x256xbf16, #tpu.memory_space<vmem>>, vector<256x256xbf16>
    %cst_8 = arith.constant dense<0.000000e+00> : vector<2x256xf32>
    %10 = tpu.matmul %8, %9, %cst_8 {dimension_numbers = #tpu.dot_dimension_numbers<[1], [0], [0], [1], [0, 0, 1, 1], [], []>} : vector<2x256xbf16>, vector<256x256xbf16>, vector<2x256xf32> -> vector<2x256xf32>
    %c0_9 = arith.constant 0 : index
    %c0_10 = arith.constant 0 : index
    %11 = vector.load %arg5[%c0_9, %c0_10] : memref<1x256xf32, #tpu.memory_space<vmem>>, vector<1x256xf32>
    %12 = vector.broadcast %11 : vector<1x256xf32> to vector<2x256xf32>
    %13 = arith.addf %10, %12 : vector<2x256xf32>
    %c0_11 = arith.constant 0 : index
    %c0_12 = arith.constant 0 : index
    %14 = vector.load %arg6[%c0_11, %c0_12] : memref<2x256xf32, #tpu.memory_space<vmem>>, vector<2x256xf32>
    tpu.vector_store %arg6[%c0_11, %c0_12], %13 {strides = array<i32>} : memref<2x256xf32, #tpu.memory_space<vmem>>, vector<2x256xf32>,
    return
  }
  func.func @transform_0(%arg0: i32) -> (i32, i32) {
    %c0_i32 = arith.constant 0 : i32
    %c0_i32_0 = arith.constant 0 : i32
    return %arg0, %c0_i32 : i32, i32
  }
  func.func @transform_1(%arg0: i32) -> (i32, i32) {
    %c0_i32 = arith.constant 0 : i32
    %c0_i32_0 = arith.constant 0 : i32
    %c0_i32_1 = arith.constant 0 : i32
    return %c0_i32, %c0_i32_0 : i32, i32
  }
  func.func @transform_2(%arg0: i32) -> (i32, i32) {
    %c0_i32 = arith.constant 0 : i32
    %c0_i32_0 = arith.constant 0 : i32
    %c0_i32_1 = arith.constant 0 : i32
    return %c0_i32, %c0_i32_0 : i32, i32
  }
  func.func @transform_3(%arg0: i32) -> (i32, i32) {
    %c0_i32 = arith.constant 0 : i32
    %c0_i32_0 = arith.constant 0 : i32
    %c0_i32_1 = arith.constant 0 : i32
    return %c0_i32, %c0_i32_0 : i32, i32
  }
  func.func @transform_4(%arg0: i32) -> (i32, i32) {
    %c0_i32 = arith.constant 0 : i32
    %c0_i32_0 = arith.constant 0 : i32
    %c0_i32_1 = arith.constant 0 : i32
    return %c0_i32, %c0_i32_0 : i32, i32
  }
  func.func @transform_5(%arg0: i32) -> (i32, i32) {
    %c0_i32 = arith.constant 0 : i32
    %c0_i32_0 = arith.constant 0 : i32
    return %arg0, %c0_i32 : i32, i32
  }
}

</mosaic_0001>

<llo_original>
// kernel: decoder_forward.1
$region0: #{decoder_forward.1}
  #allocation0 [shape = 'u32[]', space=smem, size = 0x4, offset = 0x4, fixed_abs, tag = 'smem constant byte address 0x4 - core index']
  #allocation1 [shape = 'u32[144,128]{1,0:T(1,128)}', space=vmem, size = 0x12000, scoped, tag = 'internal scratch']
  %s0 = inlined_call_operand.hbm [shape: f32[2,32], index: 0, kind: input, shape index: {}]
  %s1 = inlined_call_operand.hbm [shape: f32[32,256], index: 1, kind: input, shape index: {}]
  %s2 = inlined_call_operand.vmem [shape: f32[1,256], index: 2, kind: input, shape index: {}]
  %s3 = inlined_call_operand.hbm [shape: bf16[256,256], index: 3, kind: input, shape index: {}]
  %s4 = inlined_call_operand.vmem [shape: f32[1,256], index: 4, kind: input, shape index: {}]
  %s5 = inlined_call_operand.hbm [shape: f32[2,256], index: 5, kind: output, shape index: {}]
  %s6 = sld [smem:[#allocation0]]
  $region42: #{decoder_forward.1} parent=0
    _
  %s8 = ssub.s32 1, %s6
  %s9 = scalar_select 0, %s8, %s6
  $region1: #{decoder_forward.1} parent=0
    #allocation2 [shape = 'u8[1024]{0}', space=vmem, size = 0x400, scoped, tag = 'input window, operand 0, single buffered']
    #allocation3 [shape = 's32[1]{0}', space=sflag, size = 0x4, scoped, tag = 'scoped memory for decoder_forward.1']
    #allocation4 [shape = 's32[1]{0}', space=sflag, size = 0x4, scoped, tag = 'scoped memory for decoder_forward.1']
    #allocation5 [shape = 'u8[32768]{0}', space=vmem, size = 0x8000, scoped, tag = 'input window, operand 1, single buffered']
    #allocation6 [shape = 's32[1]{0}', space=sflag, size = 0x4, scoped, tag = 'scoped memory for decoder_forward.1']
    #allocation7 [shape = 'u8[131072]{0}', space=vmem, size = 0x20000, scoped, tag = 'input window, operand 3, single buffered']
    #allocation8 [shape = 'u8[2048]{0}', space=vmem, size = 0x800, scoped, tag = 'output window, operand 0, single buffered']
    %10 = vsyncpa [#allocation3], 0
    %11 = vsyncpa [#allocation6], 0
    %12 = vsyncpa [#allocation4], 0
    // Predicated region
    $region2: #{decoder_forward.1} parent=1 // pred_check
      _
    $region3: #{decoder_forward.1} parent=1 // pred_check_branch
      %14 = sbr.rel (0) target = $region5
    $region4: #{decoder_forward.1} parent=1 // pred_region
      %s16 = ssub.s32 32, 32
      %17 = vsyncadd [#allocation3], %s16
      %s19 = sshll.u32 [#allocation2], 4
      %s20 = int_to_ptr.vmem [resolvable:$true] %s19
      %22 = dma.hbm_to_vmem [thread:$0]  %s0, 32, %s20, [#allocation3]
    $region5: #{decoder_forward.1} parent=1 // pred_fallthru
      _
    // Predicated region
    $region6: #{decoder_forward.1} parent=1 // pred_check
      _
    $region7: #{decoder_forward.1} parent=1 // pred_check_branch
      %24 = sbr.rel (0) target = $region9
    $region8: #{decoder_forward.1} parent=1 // pred_region
      %s26 = ssub.s32 1024, 1024
      %27 = vsyncadd [#allocation6], %s26
      %s28 = sshll.u32 [#allocation5], 4
      %s29 = int_to_ptr.vmem [resolvable:$true] %s28
      %34 = dma.hbm_to_vmem [thread:$0]  %s1, 1024, %s29, [#allocation6], 256, 256, 16
    $region9: #{decoder_forward.1} parent=1 // pred_fallthru
      _
    // Predicated region
    $region10: #{decoder_forward.1} parent=1 // pred_check
      _
    $region11: #{decoder_forward.1} parent=1 // pred_check_branch
      %36 = sbr.rel (0) target = $region13
    $region12: #{decoder_forward.1} parent=1 // pred_region
      _
    $region13: #{decoder_forward.1} parent=1 // pred_fallthru
      _
    // Predicated region
    $region14: #{decoder_forward.1} parent=1 // pred_check
      _
    $region15: #{decoder_forward.1} parent=1 // pred_check_branch
      %38 = sbr.rel (0) target = $region17
    $region16: #{decoder_forward.1} parent=1 // pred_region
      %s40 = ssub.s32 4096, 4096
      %41 = vsyncadd [#allocation6], %s40
      %s42 = sshll.u32 [#allocation7], 4
      %s43 = int_to_ptr.vmem [resolvable:$true] %s42
      %48 = dma.hbm_to_vmem [thread:$0]  %s3, 4096, %s43, [#allocation6], 128, 128, 8
    $region17: #{decoder_forward.1} parent=1 // pred_fallthru
      _
    // Predicated region
    $region18: #{decoder_forward.1} parent=1 // pred_check
      _
    $region19: #{decoder_forward.1} parent=1 // pred_check_branch
      %50 = sbr.rel (0) target = $region21
    $region20: #{decoder_forward.1} parent=1 // pred_region
      _
    $region21: #{decoder_forward.1} parent=1 // pred_fallthru
      _
    // Predicated region
    $region22: #{decoder_forward.1} parent=1 // pred_check
      _
    $region23: #{decoder_forward.1} parent=1 // pred_check_branch
      %52 = sbr.rel (0) target = $region25
    $region24: #{decoder_forward.1} parent=1 // pred_region
      %53 = dma.done [#allocation3], 32
    $region25: #{decoder_forward.1} parent=1 // pred_fallthru
      _
    // Predicated region
    $region26: #{decoder_forward.1} parent=1 // pred_check
      _
    $region27: #{decoder_forward.1} parent=1 // pred_check_branch
      %55 = sbr.rel (0) target = $region29
    $region28: #{decoder_forward.1} parent=1 // pred_region
      %56 = dma.done [#allocation6], 1024
    $region29: #{decoder_forward.1} parent=1 // pred_fallthru
      _
    // Predicated region
    $region30: #{decoder_forward.1} parent=1 // pred_check
      _
    $region31: #{decoder_forward.1} parent=1 // pred_check_branch
      %58 = sbr.rel (0) target = $region33
    $region32: #{decoder_forward.1} parent=1 // pred_region
      %59 = dma.done [#allocation6], 4096
    $region33: #{decoder_forward.1} parent=1 // pred_fallthru
      _
    %v60 = vld [vmem:[#allocation2] sm:$0x3]
    %v61 = vld [vmem:[#allocation5] sm:$0xff]
    %v62 = vld [vmem:[#allocation5 + $0x8] sm:$0xff]
    %v63 = vld [vmem:[#allocation5 + $0x10] sm:$0xff]
    %v64 = vld [vmem:[#allocation5 + $0x18] sm:$0xff]
    %v65 = vld [vmem:[#allocation5 + $0x20] sm:$0xff]
    %v66 = vld [vmem:[#allocation5 + $0x28] sm:$0xff]
    %v67 = vld [vmem:[#allocation5 + $0x30] sm:$0xff]
    %v68 = vld [vmem:[#allocation5 + $0x38] sm:$0xff]
    %v69 = vld [vmem:[%s2] sm:$0x3]
    %v71 = vlaneseq
    %v72 = vshrl.u32 %v71, 7
    %v73 = vsub.s32 0, %v72
    %v74 = vrot.slane %v69, %v73
    %v75 = vlaneseq
    %v76 = vshrl.u32 %v75, 7
    %v77 = vsub.s32 1, %v76
    %v78 = vrot.slane %v69, %v77
    %vm81 = vcmask 261120
    %v83 = vsel %vm81, %v60, 0
    %85 = vmatprep.subr.mxu0 %v62
    %86 = vmatpush1.msra.mxu0 %v61
    %87 = vmatprep.subr.mxu0 %v64
    %88 = vmatpush1.msra.mxu0 %v63
    %89 = vmatprep.subr.mxu0 %v66
    %90 = vmatpush1.msra.mxu0 %v65
    %91 = vmatprep.subr.mxu0 %v68
    %92 = vmatpush1.msra.mxu0 %v67
    %93 = vmatprep.subr.mxu0 0.0
    %94 = vmatpush1.msra.mxu0 0.0
    %95 = vmatprep.subr.mxu0 0.0
    %96 = vmatpush1.msra.mxu0 0.0
    %97 = vmatprep.subr.mxu0 0.0
    %98 = vmatpush1.msra.mxu0 0.0
    %99 = vmatprep.subr.mxu0 0.0
    %100 = vmatpush1.msra.mxu0 0.0
    %101 = vmatprep.subr.mxu0 0.0
    %102 = vmatpush1.msra.mxu0 0.0
    %103 = vmatprep.subr.mxu0 0.0
    %104 = vmatpush1.msra.mxu0 0.0
    %105 = vmatprep.subr.mxu0 0.0
    %106 = vmatpush1.msra.mxu0 0.0
    %107 = vmatprep.subr.mxu0 0.0
    %108 = vmatpush1.msra.mxu0 0.0
    %109 = vmatprep.subr.mxu0 0.0
    %110 = vmatpush1.msra.mxu0 0.0
    %111 = vmatprep.subr.mxu0 0.0
    %112 = vmatpush1.msra.mxu0 0.0
    %113 = vmatprep.subr.mxu0 0.0
    %114 = vmatpush1.msra.mxu0 0.0
    %115 = vmatprep.subr.mxu0 0.0
    %116 = vmatpush1.msra.mxu0 0.0
    %117 = vmatprep.subr.mxu0 0.0
    %118 = vmatpush1.msra.mxu0 0.0
    %119 = vmatprep.subr.mxu0 0.0
    %120 = vmatpush1.msra.mxu0 0.0
    %121 = vmatprep.subr.mxu0 0.0
    %122 = vmatpush1.msra.mxu0 0.0
    %123 = vmatprep.subr.mxu0 0.0
    %124 = vmatpush1.msra.mxu0 0.0
    %125 = vmatprep.subr.mxu0 0.0
    %126 = vmatpush1.msra.mxu0 0.0
    %127 = vmatprep.subr.mxu0 0.0
    %128 = vmatpush1.msra.mxu0 0.0
    %129 = vmatprep.subr.mxu0 0.0
    %130 = vmatpush1.msra.mxu0 0.0
    %131 = vmatprep.subr.mxu0 0.0
    %132 = vmatpush1.msra.mxu0 0.0
    %133 = vmatprep.subr.mxu0 0.0
    %134 = vmatpush1.msra.mxu0 0.0
    %135 = vmatprep.subr.mxu0 0.0
    %136 = vmatpush1.msra.mxu0 0.0
    %137 = vmatprep.subr.mxu0 0.0
    %138 = vmatpush1.msra.mxu0 0.0
    %139 = vmatprep.subr.mxu0 0.0
    %140 = vmatpush1.msra.mxu0 0.0
    %141 = vmatprep.subr.mxu0 0.0
    %142 = vmatpush1.msra.mxu0 0.0
    %143 = vmatprep.subr.mxu0 0.0
    %144 = vmatpush1.msra.mxu0 0.0
    %145 = vmatprep.subr.mxu0 0.0
    %146 = vmatpush1.msra.mxu0 0.0
    %147 = vmatprep.subr.mxu0 0.0
    %148 = vmatpush1.msra.mxu0 0.0
    %149 = vmatprep.mubr.f32.mxu0 0.0
    %150 = vmatmul.mubr.f32.gmra.mrb[0].mxu0 %v83
    %v151 = vpop.f32.mrb[0].mxu0
    %v152 = vadd.f32 %v74, %v151
    %v153 = vpop.f32.mrb[0].mxu0
    %v154 = vadd.f32 %v78, %v153
    %155 = vdwg.mxu0
    %v156 = vmax.f32 %v152, 0.0
    %v157 = vmax.f32 %v154, 0.0
    %v158 = vpack.c.bf16 %v156, %v156
    %v159 = vpack.c.bf16 %v157, %v157
    %v160 = vld [vmem:[#allocation7] sm:$0xff]
    %v161 = vld [vmem:[#allocation7 + $0x8] sm:$0xff]
    %v162 = vld [vmem:[#allocation7 + $0x10] sm:$0xff]
    %v163 = vld [vmem:[#allocation7 + $0x18] sm:$0xff]
    %v164 = vld [vmem:[#allocation7 + $0x20] sm:$0xff]
    %v165 = vld [vmem:[#allocation7 + $0x28] sm:$0xff]
    %v166 = vld [vmem:[#allocation7 + $0x30] sm:$0xff]
    %v167 = vld [vmem:[#allocation7 + $0x38] sm:$0xff]
    %v168 = vld [vmem:[#allocation7 + $0x40] sm:$0xff]
    %v169 = vld [vmem:[#allocation7 + $0x48] sm:$0xff]
    %v170 = vld [vmem:[#allocation7 + $0x50] sm:$0xff]
    %v171 = vld [vmem:[#allocation7 + $0x58] sm:$0xff]
    %v172 = vld [vmem:[#allocation7 + $0x60] sm:$0xff]
    %v173 = vld [vmem:[#allocation7 + $0x68] sm:$0xff]
    %v174 = vld [vmem:[#allocation7 + $0x70] sm:$0xff]
    %v175 = vld [vmem:[#allocation7 + $0x78] sm:$0xff]
    %v176 = vld [vmem:[#allocation7 + $0x80] sm:$0xff]
    %v177 = vld [vmem:[#allocation7 + $0x88] sm:$0xff]
    %v178 = vld [vmem:[#allocation7 + $0x90] sm:$0xff]
    %v179 = vld [vmem:[#allocation7 + $0x98] sm:$0xff]
    %v180 = vld [vmem:[#allocation7 + $0xa0] sm:$0xff]
    %v181 = vld [vmem:[#allocation7 + $0xa8] sm:$0xff]
    %v182 = vld [vmem:[#allocation7 + $0xb0] sm:$0xff]
    %v183 = vld [vmem:[#allocation7 + $0xb8] sm:$0xff]
    %v184 = vld [vmem:[#allocation7 + $0xc0] sm:$0xff]
    %v185 = vld [vmem:[#allocation7 + $0xc8] sm:$0xff]
    %v186 = vld [vmem:[#allocation7 + $0xd0] sm:$0xff]
    %v187 = vld [vmem:[#allocation7 + $0xd8] sm:$0xff]
    %v188 = vld [vmem:[#allocation7 + $0xe0] sm:$0xff]
    %v189 = vld [vmem:[#allocation7 + $0xe8] sm:$0xff]
    %v190 = vld [vmem:[#allocation7 + $0xf0] sm:$0xff]
    %v191 = vld [vmem:[#allocation7 + $0xf8] sm:$0xff]
    %v192 = vld [vmem:[%s4] sm:$0x3]
    %v194 = vlaneseq
    %v195 = vshrl.u32 %v194, 7
    %v196 = vsub.s32 0, %v195
    %v197 = vrot.slane %v192, %v196
    %v198 = vlaneseq
    %v199 = vshrl.u32 %v198, 7
    %v200 = vsub.s32 1, %v199
    %v201 = vrot.slane %v192, %v200
    %v236 = vunpack.c.l.b16 %v160
    %v237 = vunpack.c.h.b16 %v160
    %v238 = vunpack.c.l.b16 %v161
    %v239 = vunpack.c.h.b16 %v161
    %v240 = vunpack.c.l.b16 %v162
    %v241 = vunpack.c.h.b16 %v162
    %v242 = vunpack.c.l.b16 %v163
    %v243 = vunpack.c.h.b16 %v163
    %v244 = vunpack.c.l.b16 %v164
    %v245 = vunpack.c.h.b16 %v164
    %v246 = vunpack.c.l.b16 %v165
    %v247 = vunpack.c.h.b16 %v165
    %v248 = vunpack.c.l.b16 %v166
    %v249 = vunpack.c.h.b16 %v166
    %v250 = vunpack.c.l.b16 %v167
    %v251 = vunpack.c.h.b16 %v167
    %v252 = vunpack.c.l.b16 %v168
    %v253 = vunpack.c.h.b16 %v168
    %v254 = vunpack.c.l.b16 %v169
    %v255 = vunpack.c.h.b16 %v169
    %v256 = vunpack.c.l.b16 %v170
    %v257 = vunpack.c.h.b16 %v170
    %v258 = vunpack.c.l.b16 %v171
    %v259 = vunpack.c.h.b16 %v171
    %v260 = vunpack.c.l.b16 %v172
    %v261 = vunpack.c.h.b16 %v172
    %v262 = vunpack.c.l.b16 %v173
    %v263 = vunpack.c.h.b16 %v173
    %v264 = vunpack.c.l.b16 %v174
    %v265 = vunpack.c.h.b16 %v174
    %v266 = vunpack.c.l.b16 %v175
    %v267 = vunpack.c.h.b16 %v175
    %v268 = vunpack.c.l.b16 %v176
    %v269 = vunpack.c.h.b16 %v176
    %v270 = vunpack.c.l.b16 %v177
    %v271 = vunpack.c.h.b16 %v177
    %v272 = vunpack.c.l.b16 %v178
    %v273 = vunpack.c.h.b16 %v178
    %v274 = vunpack.c.l.b16 %v179
    %v275 = vunpack.c.h.b16 %v179
    %v276 = vunpack.c.l.b16 %v180
    %v277 = vunpack.c.h.b16 %v180
    %v278 = vunpack.c.l.b16 %v181
    %v279 = vunpack.c.h.b16 %v181
    %v280 = vunpack.c.l.b16 %v182
    %v281 = vunpack.c.h.b16 %v182
    %v282 = vunpack.c.l.b16 %v183
    %v283 = vunpack.c.h.b16 %v183
    %v284 = vunpack.c.l.b16 %v184
    %v285 = vunpack.c.h.b16 %v184
    %v286 = vunpack.c.l.b16 %v185
    %v287 = vunpack.c.h.b16 %v185
    %v288 = vunpack.c.l.b16 %v186
    %v289 = vunpack.c.h.b16 %v186
    %v290 = vunpack.c.l.b16 %v187
    %v291 = vunpack.c.h.b16 %v187
    %v292 = vunpack.c.l.b16 %v188
    %v293 = vunpack.c.h.b16 %v188
    %v294 = vunpack.c.l.b16 %v189
    %v295 = vunpack.c.h.b16 %v189
    %v296 = vunpack.c.l.b16 %v190
    %v297 = vunpack.c.h.b16 %v190
    %v298 = vunpack.c.l.b16 %v191
    %v299 = vunpack.c.h.b16 %v191
    %v300 = vpack.c.b16 %v238, %v236
    %v301 = vpack.c.b16 %v239, %v237
    %v302 = vpack.c.b16 %v242, %v240
    %v303 = vpack.c.b16 %v243, %v241
    %v304 = vpack.c.b16 %v246, %v244
    %v305 = vpack.c.b16 %v247, %v245
    %v306 = vpack.c.b16 %v250, %v248
    %v307 = vpack.c.b16 %v251, %v249
    %v308 = vpack.c.b16 %v254, %v252
    %v309 = vpack.c.b16 %v255, %v253
    %v310 = vpack.c.b16 %v258, %v256
    %v311 = vpack.c.b16 %v259, %v257
    %v312 = vpack.c.b16 %v262, %v260
    %v313 = vpack.c.b16 %v263, %v261
    %v314 = vpack.c.b16 %v266, %v264
    %v315 = vpack.c.b16 %v267, %v265
    %v316 = vpack.c.b16 %v270, %v268
    %v317 = vpack.c.b16 %v271, %v269
    %v318 = vpack.c.b16 %v274, %v272
    %v319 = vpack.c.b16 %v275, %v273
    %v320 = vpack.c.b16 %v278, %v276
    %v321 = vpack.c.b16 %v279, %v277
    %v322 = vpack.c.b16 %v282, %v280
    %v323 = vpack.c.b16 %v283, %v281
    %v324 = vpack.c.b16 %v286, %v284
    %v325 = vpack.c.b16 %v287, %v285
    %v326 = vpack.c.b16 %v290, %v288
    %v327 = vpack.c.b16 %v291, %v289
    %v328 = vpack.c.b16 %v294, %v292
    %v329 = vpack.c.b16 %v295, %v293
    %v330 = vpack.c.b16 %v298, %v296
    %v331 = vpack.c.b16 %v299, %v297
    %364 = vmatprep.subr.bf16.mxu0 %v301
    %365 = vmatpush1.bf16.msra.mxu0 %v300
    %366 = vmatprep.subr.bf16.mxu0 %v303
    %367 = vmatpush1.bf16.msra.mxu0 %v302
    %368 = vmatprep.subr.bf16.mxu0 %v305
    %369 = vmatpush1.bf16.msra.mxu0 %v304
    %370 = vmatprep.subr.bf16.mxu0 %v307
    %371 = vmatpush1.bf16.msra.mxu0 %v306
    %372 = vmatprep.subr.bf16.mxu0 %v309
    %373 = vmatpush1.bf16.msra.mxu0 %v308
    %374 = vmatprep.subr.bf16.mxu0 %v311
    %375 = vmatpush1.bf16.msra.mxu0 %v310
    %376 = vmatprep.subr.bf16.mxu0 %v313
    %377 = vmatpush1.bf16.msra.mxu0 %v312
    %378 = vmatprep.subr.bf16.mxu0 %v315
    %379 = vmatpush1.bf16.msra.mxu0 %v314
    %380 = vmatprep.subr.bf16.mxu0 %v317
    %381 = vmatpush1.bf16.msra.mxu0 %v316
    %382 = vmatprep.subr.bf16.mxu0 %v319
    %383 = vmatpush1.bf16.msra.mxu0 %v318
    %384 = vmatprep.subr.bf16.mxu0 %v321
    %385 = vmatpush1.bf16.msra.mxu0 %v320
    %386 = vmatprep.subr.bf16.mxu0 %v323
    %387 = vmatpush1.bf16.msra.mxu0 %v322
    %388 = vmatprep.subr.bf16.mxu0 %v325
    %389 = vmatpush1.bf16.msra.mxu0 %v324
    %390 = vmatprep.subr.bf16.mxu0 %v327
    %391 = vmatpush1.bf16.msra.mxu0 %v326
    %392 = vmatprep.subr.bf16.mxu0 %v329
    %393 = vmatpush1.bf16.msra.mxu0 %v328
    %394 = vmatprep.subr.bf16.mxu0 %v331
    %395 = vmatpush1.bf16.msra.mxu0 %v330
    %396 = vmatprep.mubr.bf16.mxu0 %v159
    %397 = vmatmul.mubr.bf16.gmra.mrb[0].mxu0 %v158
    %v398 = vpop.f32.mrb[0].mxu0
    %v399 = vadd.f32 %v197, %v398
    %v400 = vpop.f32.mrb[0].mxu0
    %v401 = vadd.f32 %v201, %v400
    %v402 = vpop.f32.mrb[0].mxu0
    %v403 = vpop.f32.mrb[0].mxu0
    %404 = vdwg.mxu0
    %v407 = vcombine.low %v399, %v401
    %v409 = vunpack.c.l.s4 1983009808
    %v410 = vunpack.c.0.s8 %v409
    %v411 = vlaneseq
    %v412 = vshrl.u32 %v411, 7
    %v413 = vsub.s32 %v410, %v412
    %v414 = vrot.slane %v407, %v413
    %416 = vst [vmem:[#allocation8] sm:$0xf] %v414
    // Predicated region
    $region34: #{decoder_forward.1} parent=1 // pred_check
      _
    $region35: #{decoder_forward.1} parent=1 // pred_check_branch
      %418 = sbr.rel (0) target = $region37
    $region36: #{decoder_forward.1} parent=1 // pred_region
      %s420 = ssub.s32 64, 64
      %421 = vsyncadd [#allocation4], %s420
      %s423 = sshll.u32 [#allocation8], 4
      %s424 = int_to_ptr.vmem [resolvable:$true] %s423
      %426 = dma.vmem_to_hbm [thread:$0]  %s424, 64, %s5, [#allocation4]
    $region37: #{decoder_forward.1} parent=1 // pred_fallthru
      _
    // Predicated region
    $region38: #{decoder_forward.1} parent=1 // pred_check
      _
    $region39: #{decoder_forward.1} parent=1 // pred_check_branch
      %428 = sbr.rel (0) target = $region41
    $region40: #{decoder_forward.1} parent=1 // pred_region
      %429 = dma.done [#allocation4], 64
    $region41: #{decoder_forward.1} parent=1 // pred_fallthru
      _
    %430 = vsyncpa [#allocation3], 1
    %431 = vsyncpa [#allocation6], 1
    %432 = vsyncpa [#allocation4], 1

</llo_original>
